<compile_context>
chip_gen: v5e
topology: v5e:2x2
jax: 0.10.0
libtpu: 0.0.40
codegen_flags: <defaults>
</compile_context>

<pallas_src>
import functools

import jax
import jax.numpy as jnp
from jax.experimental import pallas as pl
from jax.experimental.pallas import tpu as pltpu


def _round_up(n, m):
    return ((n + m - 1) // m) * m


def encoder_kernel(x_ref, w_ref, b_ref, lw_ref, lb_ref, o_ref, *, pool_k, hidden_dim):
    """One block of B batch elements per grid step, batch on the lane axis.

    x_ref:  (C*L, B)         raw activation block (batch on lanes)
    w_ref:  (pool_k*H, C*L)  stacked conv weight (BN scale folded, pad absorbed)
    b_ref:  (H, 1)           conv bias + BN shift folded together
    lw_ref: (H, H)           linear weight (out, in) -- torch layout
    lb_ref: (H, 1)           linear bias
    o_ref:  (H, B)           output block (transposed; wrapper fixes layout)
    """
    # One matmul covers all pool_k conv positions: rows [p*H:(p+1)*H] of the
    # stacked weight produce conv output position p.  f32 accumulation.
    acc = jnp.dot(w_ref[...], x_ref[...], preferred_element_type=jnp.float32)

    # MaxPool1d(3,3) over those positions == elementwise max of the row blocks
    # (static sublane slices; H is a multiple of 8).  Bias + monotone ReLU
    # commute with the max, so they are applied once afterwards.
    y = acc[0:hidden_dim]
    for p in range(1, pool_k):
        y = jnp.maximum(y, acc[p * hidden_dim:(p + 1) * hidden_dim])
    y = jnp.maximum(y + b_ref[...], 0.0)                       # (H, B)

    # Flatten is a no-op (pooled length == 1); Linear + ReLU.  Dropout = id.
    z = jnp.dot(lw_ref[...], y, preferred_element_type=jnp.float32)
    o_ref[...] = jnp.maximum(z + lb_ref[...], 0.0).astype(o_ref.dtype)


def _stacked_conv_weight(conv_w, bn_scale, seq_len, pool_k):
    """Fold BN scale and the pool_k conv output positions into one weight.

    Returns (pool_k*H, C*L): row block p gives conv output position p, i.e.
    y[h, p] = sum_{c,l} W[p*H + h, c*L + l] * x[c, l]   (padding=1 absorbed).
    """
    H, C, K = conv_w.shape
    w = conv_w.astype(jnp.float32) * bn_scale[:, None, None]          # (H, C, K)
    blocks = []
    for p in range(pool_k):
        blk = jnp.zeros((H, C, seq_len), jnp.float32)
        # conv position p reads x[:, l] with kernel tap k = l - p + 1 (pad=1)
        lo = max(0, p - 1)
        hi = min(seq_len, p - 1 + K)
        blk = blk.at[:, :, lo:hi].set(w[:, :, lo - p + 1:hi - p + 1])
        blocks.append(blk.reshape(H, C * seq_len))
    return jnp.concatenate(blocks, axis=0)                            # (P*H, C*L)


def init_params(key, num_channels, hidden_dim, kernel_size=3):
    ks = jax.random.split(key, 8)
    return dict(
        conv_w=0.1 * jax.random.normal(ks[0], (hidden_dim, num_channels, kernel_size), jnp.float32),
        conv_b=0.1 * jax.random.normal(ks[1], (hidden_dim,), jnp.float32),
        bn_gamma=1.0 + 0.1 * jax.random.normal(ks[2], (hidden_dim,), jnp.float32),
        bn_beta=0.1 * jax.random.normal(ks[3], (hidden_dim,), jnp.float32),
        bn_mean=0.1 * jax.random.normal(ks[4], (hidden_dim,), jnp.float32),
        bn_var=0.5 + jnp.abs(jax.random.normal(ks[5], (hidden_dim,), jnp.float32)),
        lin_w=0.1 * jax.random.normal(ks[6], (hidden_dim, hidden_dim), jnp.float32),
        lin_b=0.1 * jax.random.normal(ks[7], (hidden_dim,), jnp.float32),
    )


def encoder_forward(x, params, *, kernel_size=3, pool_k=3, pool_s=3, eps=1e-5,
                    block_b=4096, stream_dtype=jnp.float32, output_layout="nh"):
    """x: (N, C, L) float32 in PyTorch NCL layout.

    stream_dtype: dtype of the streamed activation + output (f32 keeps exact
      PyTorch-eval semantics; bf16 halves HBM traffic, f32 accumulation kept).
    output_layout: "nh" -> (N, H) like the torch module; "hn" -> (H, N) to
      skip the post-kernel transpose when the consumer accepts batch-last.
    """
    N, C, L = x.shape
    H = params["conv_w"].shape[0]
    L_pool = (L - pool_k) // pool_s + 1
    assert L_pool == 1, "flatten + Linear(hidden, hidden) requires pooled length 1"

    # ---- Fold BatchNorm (eval running stats) + conv bias + zero padding ----
    bn_scale = params["bn_gamma"] / jnp.sqrt(params["bn_var"] + eps)          # (H,)
    w_stack = _stacked_conv_weight(params["conv_w"], bn_scale, L, pool_k)     # (P*H, C*L)
    b_fold = (params["conv_b"] * bn_scale + params["bn_beta"]
              - params["bn_mean"] * bn_scale).reshape(H, 1).astype(jnp.float32)
    lin_w = params["lin_w"].astype(jnp.float32)                               # (H, H)
    lin_b = params["lin_b"].reshape(H, 1).astype(jnp.float32)

    # ---- Activation: single (C*L, N) operand, batch on the lane axis ----
    lhs = x.reshape(N, C * L).T.astype(stream_dtype)                          # (C*L, N)

    # Batch block: as large as possible (amortize ~0.35us/step grid overhead,
    # >=1 MB streamed/step), but keep >= 2 blocks when possible so v7x's two
    # TensorCores both get work on the "parallel" axis.
    block_b = _round_up(block_b, 128)
    n_lanes = _round_up(N, 128)
    B = min(block_b, n_lanes)
    if n_lanes < 2 * B and n_lanes > 128:
        B = _round_up((n_lanes + 1) // 2, 128)
    N_pad = _round_up(N, B)
    lhs = jnp.pad(lhs, ((0, 0), (0, N_pad - N)))                              # (C*L, N_pad)

    elem_bytes = lhs.dtype.itemsize
    cost = pl.CostEstimate(
        flops=2 * N_pad * (pool_k * H * C * L + H * H),
        transcendentals=0,
        bytes_accessed=(N_pad * (C * L + H) * elem_bytes
                        + 4 * int(w_stack.size + b_fold.size + lin_w.size + lin_b.size)),
    )

    kernel = functools.partial(encoder_kernel, pool_k=pool_k, hidden_dim=H)
    out_hn = pl.pallas_call(
        kernel,
        grid=(N_pad // B,),
        in_specs=[
            pl.BlockSpec((C * L, B), lambda i: (0, i)),
            pl.BlockSpec((pool_k * H, C * L), lambda i: (0, 0)),
            pl.BlockSpec((H, 1), lambda i: (0, 0)),
            pl.BlockSpec((H, H), lambda i: (0, 0)),
            pl.BlockSpec((H, 1), lambda i: (0, 0)),
        ],
        out_specs=pl.BlockSpec((H, B), lambda i: (0, i)),
        out_shape=jax.ShapeDtypeStruct((H, N_pad), stream_dtype),
        compiler_params=pltpu.CompilerParams(
            dimension_semantics=("parallel",)),
        cost_estimate=cost,
    )(lhs, w_stack, b_fold, lin_w, lin_b)

    out_hn = out_hn[:, :N]                                                    # (H, N)
    if output_layout == "hn":
        return out_hn
    return out_hn.T                                                           # (N, H)


def encoder_reference(x, params, *, eps=1e-5):
    """Pure-JAX reference matching the PyTorch forward (eval mode)."""
    N, C, L = x.shape
    K = params["conv_w"].shape[2]
    xp = jnp.pad(x, ((0, 0), (0, 0), (1, 1)))
    y = sum(jnp.einsum("ncl,hc->nhl", xp[:, :, k:k + L], params["conv_w"][:, :, k])
            for k in range(K))
    y = y + params["conv_b"][None, :, None]
    scale = params["bn_gamma"] / jnp.sqrt(params["bn_var"] + eps)
    shift = params["bn_beta"] - params["bn_mean"] * scale
    y = y * scale[None, :, None] + shift[None, :, None]
    y = jnp.maximum(y, 0.0)
    pooled = jnp.max(y[:, :, 0:3], axis=2)                      # MaxPool1d(3,3), L_pool == 1
    z = pooled @ params["lin_w"].T + params["lin_b"]
    return jnp.maximum(z, 0.0)


if __name__ == "__main__":
    num_channels, hidden_dim, seq_len = 4, 32, 3                 # L=3 -> pooled length 1
    key = jax.random.PRNGKey(0)
    kx, kp, kx2 = jax.random.split(key, 3)
    params = init_params(kp, num_channels, hidden_dim)

    # 1) Small batch, exact eval-mode semantics (f32 streams), tight check.
    x = jax.random.normal(kx, (2, num_channels, seq_len), jnp.float32)
    out = jax.block_until_ready(encoder_forward(x, params))
    ref = jax.block_until_ready(encoder_reference(x, params))
    assert out.shape == (2, hidden_dim)
    assert jnp.allclose(out, ref, rtol=1e-4, atol=1e-4), "f32 mismatch vs reference"

    # 2) Larger batch: exercises multi-block grid + bf16 streaming (perf config).
    x2 = jax.random.normal(kx2, (300, num_channels, seq_len), jnp.float32)
    out2 = jax.block_until_ready(
        encoder_forward(x2, params, stream_dtype=jnp.bfloat16))
    ref2 = jax.block_until_ready(encoder_reference(x2, params))
    assert out2.shape == (300, hidden_dim)
    assert jnp.allclose(out2.astype(jnp.float32), ref2, rtol=5e-2, atol=5e-2), \
        "bf16 mismatch vs reference"

    print("KERNEL_OK")
</pallas_src>

<mosaic_0001>
module attributes {stable_mosaic.version = 11 : i64} {
  func.func @encoder_kernel(%arg0: i32, %arg1: memref<12x128xf32, #tpu.memory_space<vmem>>, %arg2: memref<96x12xf32, #tpu.memory_space<vmem>>, %arg3: memref<32x1xf32, #tpu.memory_space<vmem>>, %arg4: memref<32x32xf32, #tpu.memory_space<vmem>>, %arg5: memref<32x1xf32, #tpu.memory_space<vmem>>, %arg6: memref<32x128xf32, #tpu.memory_space<vmem>>) attributes {dimension_semantics = [#tpu.dimension_semantics<parallel>], iteration_bounds = array<i64: 1>, scalar_prefetch = 0 : i64, scratch_operands = 0 : i64, tpu.core_type = #tpu.core_type<tc>, window_params = [{transform_indices = @transform_0, window_bounds = array<i64: 12, 128>}, {pipeline_mode = #tpu.pipeline_mode<synchronous>, transform_indices = @transform_1, window_bounds = array<i64: 96, 12>}, {pipeline_mode = #tpu.pipeline_mode<synchronous>, transform_indices = @transform_2, window_bounds = array<i64: 32, 1>}, {pipeline_mode = #tpu.pipeline_mode<synchronous>, transform_indices = @transform_3, window_bounds = array<i64: 32, 32>}, {pipeline_mode = #tpu.pipeline_mode<synchronous>, transform_indices = @transform_4, window_bounds = array<i64: 32, 1>}, {transform_indices = @transform_5, window_bounds = array<i64: 32, 128>}]} {
    %c0 = arith.constant 0 : index
    %c0_0 = arith.constant 0 : index
    %0 = vector.load %arg2[%c0, %c0_0] : memref<96x12xf32, #tpu.memory_space<vmem>>, vector<96x12xf32>
    %c0_1 = arith.constant 0 : index
    %c0_2 = arith.constant 0 : index
    %1 = vector.load %arg1[%c0_1, %c0_2] : memref<12x128xf32, #tpu.memory_space<vmem>>, vector<12x128xf32>
    %cst = arith.constant dense<0.000000e+00> : vector<96x128xf32>
    %2 = tpu.matmul %0, %1, %cst {dimension_numbers = #tpu.dot_dimension_numbers<[1], [0], [0], [1], [0, 0, 1, 1], [], []>} : vector<96x12xf32>, vector<12x128xf32>, vector<96x128xf32> -> vector<96x128xf32>
    %3 = vector.extract_strided_slice %2 {offsets = [0, 0], sizes = [32, 128], strides = [1, 1]} : vector<96x128xf32> to vector<32x128xf32>
    %4 = vector.extract_strided_slice %2 {offsets = [32, 0], sizes = [32, 128], strides = [1, 1]} : vector<96x128xf32> to vector<32x128xf32>
    %5 = arith.maximumf %3, %4 : vector<32x128xf32>
    %6 = vector.extract_strided_slice %2 {offsets = [64, 0], sizes = [32, 128], strides = [1, 1]} : vector<96x128xf32> to vector<32x128xf32>
    %7 = arith.maximumf %5, %6 : vector<32x128xf32>
    %c0_3 = arith.constant 0 : index
    %c0_4 = arith.constant 0 : index
    %8 = vector.load %arg3[%c0_3, %c0_4] : memref<32x1xf32, #tpu.memory_space<vmem>>, vector<32x1xf32>
    %9 = vector.broadcast %8 : vector<32x1xf32> to vector<32x128xf32>
    %10 = arith.addf %7, %9 : vector<32x128xf32>
    %cst_5 = arith.constant 0.000000e+00 : f32
    %11 = vector.broadcast %cst_5 : f32 to vector<32x128xf32>
    %12 = arith.maximumf %10, %11 : vector<32x128xf32>
    %c0_6 = arith.constant 0 : index
    %c0_7 = arith.constant 0 : index
    %13 = vector.load %arg4[%c0_6, %c0_7] : memref<32x32xf32, #tpu.memory_space<vmem>>, vector<32x32xf32>
    %cst_8 = arith.constant dense<0.000000e+00> : vector<32x128xf32>
    %14 = tpu.matmul %13, %12, %cst_8 {dimension_numbers = #tpu.dot_dimension_numbers<[1], [0], [0], [1], [0, 0, 1, 1], [], []>} : vector<32x32xf32>, vector<32x128xf32>, vector<32x128xf32> -> vector<32x128xf32>
    %c0_9 = arith.constant 0 : index
    %c0_10 = arith.constant 0 : index
    %15 = vector.load %arg5[%c0_9, %c0_10] : memref<32x1xf32, #tpu.memory_space<vmem>>, vector<32x1xf32>
    %16 = vector.broadcast %15 : vector<32x1xf32> to vector<32x128xf32>
    %17 = arith.addf %14, %16 : vector<32x128xf32>
    %cst_11 = arith.constant 0.000000e+00 : f32
    %18 = vector.broadcast %cst_11 : f32 to vector<32x128xf32>
    %19 = arith.maximumf %17, %18 : vector<32x128xf32>
    %c0_12 = arith.constant 0 : index
    %c0_13 = arith.constant 0 : index
    %20 = vector.load %arg6[%c0_12, %c0_13] : memref<32x128xf32, #tpu.memory_space<vmem>>, vector<32x128xf32>
    tpu.vector_store %arg6[%c0_12, %c0_13], %19 {strides = array<i32>} : memref<32x128xf32, #tpu.memory_space<vmem>>, vector<32x128xf32>,
    return
  }
  func.func @transform_0(%arg0: i32) -> (i32, i32) {
    %c0_i32 = arith.constant 0 : i32
    %c0_i32_0 = arith.constant 0 : i32
    return %c0_i32, %arg0 : i32, i32
  }
  func.func @transform_1(%arg0: i32) -> (i32, i32) {
    %c0_i32 = arith.constant 0 : i32
    %c0_i32_0 = arith.constant 0 : i32
    %c0_i32_1 = arith.constant 0 : i32
    return %c0_i32, %c0_i32_0 : i32, i32
  }
  func.func @transform_2(%arg0: i32) -> (i32, i32) {
    %c0_i32 = arith.constant 0 : i32
    %c0_i32_0 = arith.constant 0 : i32
    %c0_i32_1 = arith.constant 0 : i32
    return %c0_i32, %c0_i32_0 : i32, i32
  }
  func.func @transform_3(%arg0: i32) -> (i32, i32) {
    %c0_i32 = arith.constant 0 : i32
    %c0_i32_0 = arith.constant 0 : i32
    %c0_i32_1 = arith.constant 0 : i32
    return %c0_i32, %c0_i32_0 : i32, i32
  }
  func.func @transform_4(%arg0: i32) -> (i32, i32) {
    %c0_i32 = arith.constant 0 : i32
    %c0_i32_0 = arith.constant 0 : i32
    %c0_i32_1 = arith.constant 0 : i32
    return %c0_i32, %c0_i32_0 : i32, i32
  }
  func.func @transform_5(%arg0: i32) -> (i32, i32) {
    %c0_i32 = arith.constant 0 : i32
    %c0_i32_0 = arith.constant 0 : i32
    return %c0_i32, %arg0 : i32, i32
  }
}

</mosaic_0001>

<llo_original>
// kernel: tpu_custom_call.1
$region0: #{tpu_custom_call.1}
  #allocation0 [shape = 'u32[]', space=smem, size = 0x4, offset = 0x4, fixed_abs, tag = 'smem constant byte address 0x4 - core index']
  #allocation1 [shape = 'u32[72,128]{1,0:T(1,128)}', space=vmem, size = 0x9000, scoped, tag = 'internal scratch']
  %s0 = inlined_call_operand.vmem [shape: f32[12,128], index: 0, kind: input, shape index: {}]
  %s1 = inlined_call_operand.vmem [shape: f32[96,12], index: 1, kind: input, shape index: {}]
  %s2 = inlined_call_operand.vmem [shape: f32[32,1], index: 2, kind: input, shape index: {}]
  %s3 = inlined_call_operand.vmem [shape: f32[32,32], index: 3, kind: input, shape index: {}]
  %s4 = inlined_call_operand.vmem [shape: f32[32,1], index: 4, kind: input, shape index: {}]
  %s5 = inlined_call_operand.hbm [shape: f32[32,128], index: 5, kind: output, shape index: {}]
  %s6 = sld [smem:[#allocation0]]
  $region30: #{tpu_custom_call.1} parent=0
    _
  %s8 = ssub.s32 1, %s6
  %s9 = scalar_select 0, %s8, %s6
  $region1: #{tpu_custom_call.1} parent=0
    #allocation2 [shape = 'u8[16384]{0}', space=vmem, size = 0x4000, scoped, tag = 'output window, operand 0, single buffered']
    #allocation3 [shape = 's32[1]{0}', space=sflag, size = 0x4, scoped, tag = 'scoped memory for tpu_custom_call.1']
    %10 = vsyncpa [#allocation3], 0
    // Predicated region
    $region2: #{tpu_custom_call.1} parent=1 // pred_check
      _
    $region3: #{tpu_custom_call.1} parent=1 // pred_check_branch
      %12 = sbr.rel (0) target = $region5
    $region4: #{tpu_custom_call.1} parent=1 // pred_region
      _
    $region5: #{tpu_custom_call.1} parent=1 // pred_fallthru
      _
    // Predicated region
    $region6: #{tpu_custom_call.1} parent=1 // pred_check
      _
    $region7: #{tpu_custom_call.1} parent=1 // pred_check_branch
      %14 = sbr.rel (0) target = $region9
    $region8: #{tpu_custom_call.1} parent=1 // pred_region
      _
    $region9: #{tpu_custom_call.1} parent=1 // pred_fallthru
      _
    // Predicated region
    $region10: #{tpu_custom_call.1} parent=1 // pred_check
      _
    $region11: #{tpu_custom_call.1} parent=1 // pred_check_branch
      %16 = sbr.rel (0) target = $region13
    $region12: #{tpu_custom_call.1} parent=1 // pred_region
      _
    $region13: #{tpu_custom_call.1} parent=1 // pred_fallthru
      _
    // Predicated region
    $region14: #{tpu_custom_call.1} parent=1 // pred_check
      _
    $region15: #{tpu_custom_call.1} parent=1 // pred_check_branch
      %18 = sbr.rel (0) target = $region17
    $region16: #{tpu_custom_call.1} parent=1 // pred_region
      _
    $region17: #{tpu_custom_call.1} parent=1 // pred_fallthru
      _
    // Predicated region
    $region18: #{tpu_custom_call.1} parent=1 // pred_check
      _
    $region19: #{tpu_custom_call.1} parent=1 // pred_check_branch
      %20 = sbr.rel (0) target = $region21
    $region20: #{tpu_custom_call.1} parent=1 // pred_region
      _
    $region21: #{tpu_custom_call.1} parent=1 // pred_fallthru
      _
    %v21 = vld [vmem:[%s1] sm:$0xff]
    %v22 = vld [vmem:[%s1 + $0x8] sm:$0xff]
    %v23 = vld [vmem:[%s1 + $0x10] sm:$0xff]
    %v24 = vld [vmem:[%s1 + $0x18] sm:$0xff]
    %v25 = vld [vmem:[%s1 + $0x20] sm:$0xff]
    %v26 = vld [vmem:[%s1 + $0x28] sm:$0xff]
    %v27 = vld [vmem:[%s1 + $0x30] sm:$0xff]
    %v28 = vld [vmem:[%s1 + $0x38] sm:$0xff]
    %v29 = vld [vmem:[%s1 + $0x40] sm:$0xff]
    %v30 = vld [vmem:[%s1 + $0x48] sm:$0xff]
    %v31 = vld [vmem:[%s1 + $0x50] sm:$0xff]
    %v32 = vld [vmem:[%s1 + $0x58] sm:$0xff]
    %v33 = vld [vmem:[%s0] sm:$0xff]
    %v34 = vld [vmem:[%s0 + $0x8] sm:$0xf]
    %vm35 = vcmask 97280
    %v37 = vsel %vm35, %v21, 0
    %v40 = vsel %vm35, %v22, 0
    %v43 = vsel %vm35, %v23, 0
    %v46 = vsel %vm35, %v24, 0
    %v49 = vsel %vm35, %v25, 0
    %v52 = vsel %vm35, %v26, 0
    %v55 = vsel %vm35, %v27, 0
    %v58 = vsel %vm35, %v28, 0
    %v61 = vsel %vm35, %v29, 0
    %v64 = vsel %vm35, %v30, 0
    %v67 = vsel %vm35, %v31, 0
    %v70 = vsel %vm35, %v32, 0
    %vm72 = vcmask 1043456
    %v74 = vsel %vm72, %v34, 0
    %76 = vmatpush.msra.mxu0 0.0
    %77 = vmatpush.msra.mxu0 0.0
    %78 = vmatpush.msra.mxu0 0.0
    %79 = vmatpush.msra.mxu0 0.0
    %80 = vmatpush.msra.mxu0 0.0
    %81 = vmatpush.msra.mxu0 0.0
    %82 = vmatpush.msra.mxu0 0.0
    %83 = vmatpush.msra.mxu0 0.0
    %84 = vmatpush.msra.mxu0 0.0
    %85 = vmatpush.msra.mxu0 0.0
    %86 = vmatpush.msra.mxu0 0.0
    %87 = vmatpush.msra.mxu0 0.0
    %88 = vmatpush.msra.mxu0 0.0
    %89 = vmatpush.msra.mxu0 0.0
    %90 = vmatpush.msra.mxu0 %v74
    %91 = vmatpush.msra.mxu0 %v33
    %92 = vmatmul.f32.gmra.mxu0 %v37
    %v93 = vpop.f32.mrf.mxu0
    %v94 = vadd.f32 0.0, %v93
    %95 = vmatmul.f32.gmra.mxu0 %v40
    %v96 = vpop.f32.mrf.mxu0
    %v97 = vadd.f32 0.0, %v96
    %98 = vmatmul.f32.gmra.mxu0 %v43
    %v99 = vpop.f32.mrf.mxu0
    %v100 = vadd.f32 0.0, %v99
    %101 = vmatmul.f32.gmra.mxu0 %v46
    %v102 = vpop.f32.mrf.mxu0
    %v103 = vadd.f32 0.0, %v102
    %104 = vmatmul.f32.gmra.mxu0 %v49
    %v105 = vpop.f32.mrf.mxu0
    %v106 = vadd.f32 0.0, %v105
    %107 = vmatmul.f32.gmra.mxu0 %v52
    %v108 = vpop.f32.mrf.mxu0
    %v109 = vadd.f32 0.0, %v108
    %110 = vmatmul.f32.gmra.mxu0 %v55
    %v111 = vpop.f32.mrf.mxu0
    %v112 = vadd.f32 0.0, %v111
    %113 = vmatmul.f32.gmra.mxu0 %v58
    %v114 = vpop.f32.mrf.mxu0
    %v115 = vadd.f32 0.0, %v114
    %116 = vmatmul.f32.gmra.mxu0 %v61
    %v117 = vpop.f32.mrf.mxu0
    %v118 = vadd.f32 0.0, %v117
    %119 = vmatmul.f32.gmra.mxu0 %v64
    %v120 = vpop.f32.mrf.mxu0
    %v121 = vadd.f32 0.0, %v120
    %122 = vmatmul.f32.gmra.mxu0 %v67
    %v123 = vpop.f32.mrf.mxu0
    %v124 = vadd.f32 0.0, %v123
    %125 = vmatmul.f32.gmra.mxu0 %v70
    %v126 = vpop.f32.mrf.mxu0
    %v127 = vadd.f32 0.0, %v126
    %128 = vdwg.mxu0
    %v129 = vmax.f32 %v94, %v106
    %v130 = vmax.f32 %v97, %v109
    %v131 = vmax.f32 %v100, %v112
    %v132 = vmax.f32 %v103, %v115
    %v133 = vmax.f32 %v129, %v118
    %v134 = vmax.f32 %v130, %v121
    %v135 = vmax.f32 %v131, %v124
    %v136 = vmax.f32 %v132, %v127
    %v137 = vld [vmem:[%s2] sm:$0xff]
    %v138 = vld [vmem:[%s2 + $0x8] sm:$0xff]
    %v139 = vld [vmem:[%s2 + $0x10] sm:$0xff]
    %v140 = vld [vmem:[%s2 + $0x18] sm:$0xff]
    %142 = vset.pattern.permute.xlu0 0
    %143 = vperm.xlu0 %142, %v137
    %v144 = vpop.permute.xlu0 %143
    %147 = vset.pattern.permute.xlu0 0
    %148 = vperm.xlu0 %147, %v138
    %v149 = vpop.permute.xlu0 %148
    %152 = vset.pattern.permute.xlu0 0
    %153 = vperm.xlu0 %152, %v139
    %v154 = vpop.permute.xlu0 %153
    %157 = vset.pattern.permute.xlu0 0
    %158 = vperm.xlu0 %157, %v140
    %v159 = vpop.permute.xlu0 %158
    %v161 = vadd.f32 %v133, %v144
    %v162 = vadd.f32 %v134, %v149
    %v163 = vadd.f32 %v135, %v154
    %v164 = vadd.f32 %v136, %v159
    %v165 = vmax.f32 %v161, 0.0
    %v166 = vmax.f32 %v162, 0.0
    %v167 = vmax.f32 %v163, 0.0
    %v168 = vmax.f32 %v164, 0.0
    %v169 = vld [vmem:[%s3] sm:$0xff]
    %v170 = vld [vmem:[%s3 + $0x8] sm:$0xff]
    %v171 = vld [vmem:[%s3 + $0x10] sm:$0xff]
    %v172 = vld [vmem:[%s3 + $0x18] sm:$0xff]
    %v173 = vld [vmem:[%s4] sm:$0xff]
    %v174 = vld [vmem:[%s4 + $0x8] sm:$0xff]
    %v175 = vld [vmem:[%s4 + $0x10] sm:$0xff]
    %v176 = vld [vmem:[%s4 + $0x18] sm:$0xff]
    %178 = vset.pattern.permute.xlu0 0
    %179 = vperm.xlu0 %178, %v173
    %v180 = vpop.permute.xlu0 %179
    %183 = vset.pattern.permute.xlu0 0
    %184 = vperm.xlu0 %183, %v174
    %v185 = vpop.permute.xlu0 %184
    %188 = vset.pattern.permute.xlu0 0
    %189 = vperm.xlu0 %188, %v175
    %v190 = vpop.permute.xlu0 %189
    %193 = vset.pattern.permute.xlu0 0
    %194 = vperm.xlu0 %193, %v176
    %v195 = vpop.permute.xlu0 %194
    %vm197 = vcmask 261120
    %v199 = vsel %vm197, %v169, 0
    %v202 = vsel %vm197, %v170, 0
    %v205 = vsel %vm197, %v171, 0
    %v208 = vsel %vm197, %v172, 0
    %210 = vmatpush.msra.mxu0 0.0
    %211 = vmatpush.msra.mxu0 0.0
    %212 = vmatpush.msra.mxu0 0.0
    %213 = vmatpush.msra.mxu0 0.0
    %214 = vmatpush.msra.mxu0 0.0
    %215 = vmatpush.msra.mxu0 0.0
    %216 = vmatpush.msra.mxu0 0.0
    %217 = vmatpush.msra.mxu0 0.0
    %218 = vmatpush.msra.mxu0 0.0
    %219 = vmatpush.msra.mxu0 0.0
    %220 = vmatpush.msra.mxu0 0.0
    %221 = vmatpush.msra.mxu0 0.0
    %222 = vmatpush.msra.mxu0 %v168
    %223 = vmatpush.msra.mxu0 %v167
    %224 = vmatpush.msra.mxu0 %v166
    %225 = vmatpush.msra.mxu0 %v165
    %226 = vmatmul.f32.gmra.mxu0 %v199
    %v227 = vpop.f32.mrf.mxu0
    %v228 = vadd.f32 %v180, %v227
    %229 = vmatmul.f32.gmra.mxu0 %v202
    %v230 = vpop.f32.mrf.mxu0
    %v231 = vadd.f32 %v185, %v230
    %232 = vmatmul.f32.gmra.mxu0 %v205
    %v233 = vpop.f32.mrf.mxu0
    %v234 = vadd.f32 %v190, %v233
    %235 = vmatmul.f32.gmra.mxu0 %v208
    %v236 = vpop.f32.mrf.mxu0
    %v237 = vadd.f32 %v195, %v236
    %238 = vdwg.mxu0
    %v239 = vmax.f32 %v228, 0.0
    %v240 = vmax.f32 %v231, 0.0
    %v241 = vmax.f32 %v234, 0.0
    %v242 = vmax.f32 %v237, 0.0
    %243 = vst [vmem:[#allocation2] sm:$0xff] %v239
    %244 = vst [vmem:[#allocation2 + $0x8] sm:$0xff] %v240
    %245 = vst [vmem:[#allocation2 + $0x10] sm:$0xff] %v241
    %246 = vst [vmem:[#allocation2 + $0x18] sm:$0xff] %v242
    // Predicated region
    $region22: #{tpu_custom_call.1} parent=1 // pred_check
      _
    $region23: #{tpu_custom_call.1} parent=1 // pred_check_branch
      %248 = sbr.rel (0) target = $region25
    $region24: #{tpu_custom_call.1} parent=1 // pred_region
      %250 = vsyncadd [#allocation3], 0
      %s251 = sshll.u32 [#allocation2], 4
      %s252 = int_to_ptr.vmem [resolvable:$true] %s251
      %s253 = sshll.u32 %s5, 4
      %s254 = int_to_ptr.hbm [resolvable:$true] %s253
      %259 = dma.vmem_to_hbm [thread:$0]  %s252, 512, %s254, [#allocation3], 128, 128, 8
    $region25: #{tpu_custom_call.1} parent=1 // pred_fallthru
      _
    // Predicated region
    $region26: #{tpu_custom_call.1} parent=1 // pred_check
      _
    $region27: #{tpu_custom_call.1} parent=1 // pred_check_branch
      %261 = sbr.rel (0) target = $region29
    $region28: #{tpu_custom_call.1} parent=1 // pred_region
      %263 = dma.done [#allocation3], 512
    $region29: #{tpu_custom_call.1} parent=1 // pred_fallthru
      _
    %264 = vsyncpa [#allocation3], 1

</llo_original>
